<compile_context>
chip_gen: v6e
topology: v6e:2x2x1
jax: 0.10.0
libtpu: 0.0.40
codegen_flags: <defaults>
</compile_context>

<pallas_src>
import math

import jax
import jax.numpy as jnp
from jax.experimental import pallas as pl
from jax.experimental.pallas import tpu as pltpu


# ---------------------------------------------------------------------------
# Pallas kernel: one launch, direct HBM->HBM slab DMAs for every rank / array
# ---------------------------------------------------------------------------
def kjt_one_to_all_split(groups, *, num_issue_shards: int = 1):
    """Split several dense-padded KJTs along the feature axis, one slab per rank.

    Args:
      groups: list of (arrays, features_per_rank) where `arrays` is a tuple of
        jnp arrays sharing the same leading feature dim F (e.g. (values,
        lengths) or (values, lengths, weights)) and sum(features_per_rank)==F.
      num_issue_shards: how many grid shards issue DMA descriptors. Keep 1 on
        v5e/v6e (single TensorCore); 2 on v7x spreads descriptor issue/wait
        across both TensorCores.

    Returns:
      list (per group) of list (per rank) of tuples of split arrays, same
      order as `arrays`.

    Large 3-D slabs (values / weights) are copied inside one pallas_call as
    direct HBM->HBM async DMAs; tiny 2-D slabs (lengths) use plain XLA slices.
    """
    flat_inputs = []
    input_index = {}      # id(array) -> position in flat_inputs
    out_shapes = []
    copy_plan = []        # (src_input_idx, feature_offset, n_features, dst_output_idx, nbytes)
    result_slots = []     # per group / per rank / per array: ("dma", out_idx) | ("xla", array)

    for arrays, feats_per_rank in groups:
        arrays = tuple(arrays)
        F = arrays[0].shape[0]
        assert sum(feats_per_rank) == F, "features_per_rank must sum to num features"
        for a in arrays:
            assert a.shape[0] == F

        group_slots = []
        offset = 0
        for n in feats_per_rank:
            rank_slots = []
            for a in arrays:
                if n > 0 and a.ndim >= 3:
                    # Big slab (values / weights): single direct HBM->HBM DMA.
                    key = id(a)
                    if key not in input_index:
                        input_index[key] = len(flat_inputs)
                        flat_inputs.append(a)
                    src_idx = input_index[key]
                    shape = (n,) + a.shape[1:]
                    out_idx = len(out_shapes)
                    out_shapes.append(jax.ShapeDtypeStruct(shape, a.dtype))
                    nbytes = math.prod(shape) * a.dtype.itemsize
                    copy_plan.append((src_idx, offset, n, out_idx, nbytes))
                    rank_slots.append(("dma", out_idx))
                else:
                    # Tiny / 2-D (lengths) or empty slab: contiguous leading-axis
                    # XLA slice (avoids sublane-misaligned 2-D DMA descriptors
                    # and pure-latency copies with zero bandwidth benefit).
                    rank_slots.append(("xla", a[offset:offset + n]))
            group_slots.append(rank_slots)
            offset += n
        result_slots.append(group_slots)

    outs = ()
    if copy_plan:
        # Issue bandwidth-dominant transfers first.
        copy_plan.sort(key=lambda c: c[4], reverse=True)
        total_bytes = sum(c[4] for c in copy_plan)

        num_in = len(flat_inputs)
        num_out = len(out_shapes)
        num_shards = max(1, min(int(num_issue_shards), len(copy_plan)))
        # Round-robin copies onto issue shards (only >1 on v7x / 2-TC chips).
        shard_plans = [copy_plan[s::num_shards] for s in range(num_shards)]

        def kernel(*refs):
            in_refs = refs[:num_in]
            out_refs = refs[num_in:num_in + num_out]
            sem = refs[num_in + num_out]   # DMA semaphore pool, one per shard

            def issue_and_wait(plan, sem_ref):
                copies = []
                # Issue every slab copy up front (descriptors overlap), then wait.
                for src, off, n, dst, _ in plan:
                    cp = pltpu.make_async_copy(
                        in_refs[src].at[pl.ds(off, n)],  # contiguous feature-major slab
                        out_refs[dst],
                        sem_ref,                         # single shared sem per shard
                    )
                    cp.start()
                    copies.append(cp)
                for cp in copies:
                    cp.wait()

            if num_shards == 1:
                issue_and_wait(shard_plans[0], sem.at[0])
            else:
                shard_id = pl.program_id(0)
                for s, plan in enumerate(shard_plans):
                    @pl.when(shard_id == s)
                    def _(plan=plan, s=s):
                        issue_and_wait(plan, sem.at[s])

        call_kwargs = dict(
            out_shape=tuple(out_shapes),
            in_specs=[pl.BlockSpec(memory_space=pl.ANY)] * num_in,
            out_specs=tuple(pl.BlockSpec(memory_space=pl.ANY) for _ in range(num_out)),
            scratch_shapes=[pltpu.SemaphoreType.DMA((num_shards,))],
            cost_estimate=pl.CostEstimate(
                flops=0, transcendentals=0, bytes_accessed=2 * int(total_bytes)),
        )
        if num_shards > 1:
            call_kwargs["grid"] = (num_shards,)
            call_kwargs["compiler_params"] = pltpu.CompilerParams(
                dimension_semantics=("parallel",))

        outs = pl.pallas_call(kernel, **call_kwargs)(*flat_inputs)
        if not isinstance(outs, (tuple, list)):
            outs = (outs,)

    # Reassemble the per-group / per-rank structure.
    results = []
    for group_slots in result_slots:
        group_res = []
        for rank_slots in group_slots:
            rank_arrays = []
            for kind, payload in rank_slots:
                rank_arrays.append(outs[payload] if kind == "dma" else payload)
            group_res.append(tuple(rank_arrays))
        results.append(group_res)
    return results


# ---------------------------------------------------------------------------
# Module wrapper (mirrors SparseFeaturesOneToAll.forward structure)
# ---------------------------------------------------------------------------
class SparseFeaturesOneToAll:
    def __init__(self, id_list_features_per_rank, id_score_list_features_per_rank,
                 world_size, num_issue_shards: int = 1):
        self._world_size = world_size
        self._id_list_features_per_rank = list(id_list_features_per_rank)
        self._id_score_list_features_per_rank = list(id_score_list_features_per_rank)
        # num_issue_shards=2 spreads DMA descriptor issue/wait across v7x's
        # two TensorCores; keep 1 on v5e/v6e (single TC, would serialize).
        self._num_issue_shards = num_issue_shards
        # NOTE: the PyTorch module has no learned parameters.

    def forward(self, sparse_features):
        id_list = sparse_features.get("id_list_features")
        id_score = sparse_features.get("id_score_list_features")

        groups = []
        tags = []
        if id_list is not None:
            groups.append(((id_list["values"], id_list["lengths"]),
                           self._id_list_features_per_rank))
            tags.append("id_list")
        if id_score is not None:
            groups.append(((id_score["values"], id_score["lengths"],
                            id_score["weights"]),
                           self._id_score_list_features_per_rank))
            tags.append("id_score")

        # One pallas_call covers both KJTs and all ranks.
        split_results = (kjt_one_to_all_split(groups,
                                              num_issue_shards=self._num_issue_shards)
                         if groups else [])

        id_list_split = [None] * self._world_size
        id_score_split = [None] * self._world_size
        for tag, per_rank in zip(tags, split_results):
            if tag == "id_list":
                id_list_split = [
                    {"values": v, "lengths": l, "weights": None}
                    for (v, l) in per_rank
                ]
            else:
                id_score_split = [
                    {"values": v, "lengths": l, "weights": w}
                    for (v, l, w) in per_rank
                ]

        # TODO(synk): the torch module returns NoWait(SparseFeaturesList(...)) and, in
        # a real multi-device setup, ships each slab to its rank. The ideal form fuses
        # this split with the remote one-to-all (make_async_remote_copy with
        # in_refs[src].at[pl.ds(off, n)] as the source, barrier sem + collective_id),
        # never materializing per-rank slabs locally; here we perform the local split
        # only (single device) and return the plain per-rank list.
        return [
            {"id_list_features": a, "id_score_list_features": b}
            for a, b in zip(id_list_split, id_score_split)
        ]


# ---------------------------------------------------------------------------
# Example / correctness check
# ---------------------------------------------------------------------------
if __name__ == "__main__":
    key = jax.random.PRNGKey(0)
    k1, k2, k3, k4, k5 = jax.random.split(key, 5)

    world_size = 2
    id_list_features_per_rank = [2, 3]        # F_id = 5
    id_score_list_features_per_rank = [1, 2]  # F_ws = 3
    B, L = 8, 128                             # batch, padded max ids per sample

    F_id = sum(id_list_features_per_rank)
    F_ws = sum(id_score_list_features_per_rank)

    id_list_features = {
        "values": jax.random.randint(k1, (F_id, B, L), 0, 1000, dtype=jnp.int32),
        "lengths": jax.random.randint(k2, (F_id, B), 0, L + 1, dtype=jnp.int32),
    }
    id_score_list_features = {
        "values": jax.random.randint(k3, (F_ws, B, L), 0, 1000, dtype=jnp.int32),
        "lengths": jax.random.randint(k4, (F_ws, B), 0, L + 1, dtype=jnp.int32),
        "weights": jax.random.uniform(k5, (F_ws, B, L), dtype=jnp.float32),
    }

    module = SparseFeaturesOneToAll(
        id_list_features_per_rank, id_score_list_features_per_rank, world_size)

    per_rank = module.forward({
        "id_list_features": id_list_features,
        "id_score_list_features": id_score_list_features,
    })
    jax.block_until_ready(per_rank)

    # Reference check: plain-JAX feature-axis slicing.
    def _check(split_list, feats_per_rank, values, lengths, weights=None):
        off = 0
        for r, n in enumerate(feats_per_rank):
            out = split_list[r]
            assert jnp.array_equal(out["values"], values[off:off + n])
            assert jnp.array_equal(out["lengths"], lengths[off:off + n])
            if weights is not None:
                assert jnp.array_equal(out["weights"], weights[off:off + n])
            off += n

    _check([r["id_list_features"] for r in per_rank],
           id_list_features_per_rank,
           id_list_features["values"], id_list_features["lengths"])
    _check([r["id_score_list_features"] for r in per_rank],
           id_score_list_features_per_rank,
           id_score_list_features["values"], id_score_list_features["lengths"],
           id_score_list_features["weights"])

    print("KERNEL_OK")
</pallas_src>

<mosaic_0001>
module attributes {stable_mosaic.version = 11 : i64} {
  func.func @kernel(%arg0: memref<5x8x128xi32, #tpu.memory_space<any>>, %arg1: memref<3x8x128xi32, #tpu.memory_space<any>>, %arg2: memref<3x8x128xf32, #tpu.memory_space<any>>, %arg3: memref<2x8x128xi32, #tpu.memory_space<any>>, %arg4: memref<3x8x128xi32, #tpu.memory_space<any>>, %arg5: memref<1x8x128xi32, #tpu.memory_space<any>>, %arg6: memref<1x8x128xf32, #tpu.memory_space<any>>, %arg7: memref<2x8x128xi32, #tpu.memory_space<any>>, %arg8: memref<2x8x128xf32, #tpu.memory_space<any>>, %arg9: memref<1x!tpu.dma_semaphore, #tpu.memory_space<semaphore_mem>>) attributes {dimension_semantics = [], scalar_prefetch = 0 : i64, scratch_operands = 1 : i64, tpu.core_type = #tpu.core_type<tc>} {
    %c0_i32 = arith.constant 0 : i32
    %c2_i32 = arith.constant 2 : i32
    %c0_i32_0 = arith.constant 0 : i32
    %c0_i32_1 = arith.constant 0 : i32
    %0 = tpu.memref_slice %arg0[%c2_i32, %c0_i32_0, %c0_i32_1] : memref<5x8x128xi32, #tpu.memory_space<any>> -> memref<3x8x128xi32, #tpu.memory_space<any>>
    %1 = tpu.memref_slice %arg9[%c0_i32] : memref<1x!tpu.dma_semaphore, #tpu.memory_space<semaphore_mem>> -> memref<1x!tpu.dma_semaphore, #tpu.memory_space<semaphore_mem>>
    %2 = tpu.memref_squeeze %1 : memref<1x!tpu.dma_semaphore, #tpu.memory_space<semaphore_mem>> -> memref<!tpu.dma_semaphore, #tpu.memory_space<semaphore_mem>>
    tpu.enqueue_dma source(%0 : memref<3x8x128xi32, #tpu.memory_space<any>>) target(%arg4 : memref<3x8x128xi32, #tpu.memory_space<any>>) target_semaphore(%2 : memref<!tpu.dma_semaphore, #tpu.memory_space<semaphore_mem>>)
    %c0_i32_2 = arith.constant 0 : i32
    %c0_i32_3 = arith.constant 0 : i32
    %c0_i32_4 = arith.constant 0 : i32
    %c0_i32_5 = arith.constant 0 : i32
    %3 = tpu.memref_slice %arg0[%c0_i32_3, %c0_i32_4, %c0_i32_5] : memref<5x8x128xi32, #tpu.memory_space<any>> -> memref<2x8x128xi32, #tpu.memory_space<any>>
    %4 = tpu.memref_slice %arg9[%c0_i32_2] : memref<1x!tpu.dma_semaphore, #tpu.memory_space<semaphore_mem>> -> memref<1x!tpu.dma_semaphore, #tpu.memory_space<semaphore_mem>>
    %5 = tpu.memref_squeeze %4 : memref<1x!tpu.dma_semaphore, #tpu.memory_space<semaphore_mem>> -> memref<!tpu.dma_semaphore, #tpu.memory_space<semaphore_mem>>
    tpu.enqueue_dma source(%3 : memref<2x8x128xi32, #tpu.memory_space<any>>) target(%arg3 : memref<2x8x128xi32, #tpu.memory_space<any>>) target_semaphore(%5 : memref<!tpu.dma_semaphore, #tpu.memory_space<semaphore_mem>>)
    %c0_i32_6 = arith.constant 0 : i32
    %c1_i32 = arith.constant 1 : i32
    %c0_i32_7 = arith.constant 0 : i32
    %c0_i32_8 = arith.constant 0 : i32
    %6 = tpu.memref_slice %arg1[%c1_i32, %c0_i32_7, %c0_i32_8] : memref<3x8x128xi32, #tpu.memory_space<any>> -> memref<2x8x128xi32, #tpu.memory_space<any>>
    %7 = tpu.memref_slice %arg9[%c0_i32_6] : memref<1x!tpu.dma_semaphore, #tpu.memory_space<semaphore_mem>> -> memref<1x!tpu.dma_semaphore, #tpu.memory_space<semaphore_mem>>
    %8 = tpu.memref_squeeze %7 : memref<1x!tpu.dma_semaphore, #tpu.memory_space<semaphore_mem>> -> memref<!tpu.dma_semaphore, #tpu.memory_space<semaphore_mem>>
    tpu.enqueue_dma source(%6 : memref<2x8x128xi32, #tpu.memory_space<any>>) target(%arg7 : memref<2x8x128xi32, #tpu.memory_space<any>>) target_semaphore(%8 : memref<!tpu.dma_semaphore, #tpu.memory_space<semaphore_mem>>)
    %c0_i32_9 = arith.constant 0 : i32
    %c1_i32_10 = arith.constant 1 : i32
    %c0_i32_11 = arith.constant 0 : i32
    %c0_i32_12 = arith.constant 0 : i32
    %9 = tpu.memref_slice %arg2[%c1_i32_10, %c0_i32_11, %c0_i32_12] : memref<3x8x128xf32, #tpu.memory_space<any>> -> memref<2x8x128xf32, #tpu.memory_space<any>>
    %10 = tpu.memref_slice %arg9[%c0_i32_9] : memref<1x!tpu.dma_semaphore, #tpu.memory_space<semaphore_mem>> -> memref<1x!tpu.dma_semaphore, #tpu.memory_space<semaphore_mem>>
    %11 = tpu.memref_squeeze %10 : memref<1x!tpu.dma_semaphore, #tpu.memory_space<semaphore_mem>> -> memref<!tpu.dma_semaphore, #tpu.memory_space<semaphore_mem>>
    tpu.enqueue_dma source(%9 : memref<2x8x128xf32, #tpu.memory_space<any>>) target(%arg8 : memref<2x8x128xf32, #tpu.memory_space<any>>) target_semaphore(%11 : memref<!tpu.dma_semaphore, #tpu.memory_space<semaphore_mem>>)
    %c0_i32_13 = arith.constant 0 : i32
    %c0_i32_14 = arith.constant 0 : i32
    %c0_i32_15 = arith.constant 0 : i32
    %c0_i32_16 = arith.constant 0 : i32
    %12 = tpu.memref_slice %arg1[%c0_i32_14, %c0_i32_15, %c0_i32_16] : memref<3x8x128xi32, #tpu.memory_space<any>> -> memref<1x8x128xi32, #tpu.memory_space<any>>
    %13 = tpu.memref_slice %arg9[%c0_i32_13] : memref<1x!tpu.dma_semaphore, #tpu.memory_space<semaphore_mem>> -> memref<1x!tpu.dma_semaphore, #tpu.memory_space<semaphore_mem>>
    %14 = tpu.memref_squeeze %13 : memref<1x!tpu.dma_semaphore, #tpu.memory_space<semaphore_mem>> -> memref<!tpu.dma_semaphore, #tpu.memory_space<semaphore_mem>>
    tpu.enqueue_dma source(%12 : memref<1x8x128xi32, #tpu.memory_space<any>>) target(%arg5 : memref<1x8x128xi32, #tpu.memory_space<any>>) target_semaphore(%14 : memref<!tpu.dma_semaphore, #tpu.memory_space<semaphore_mem>>)
    %c0_i32_17 = arith.constant 0 : i32
    %c0_i32_18 = arith.constant 0 : i32
    %c0_i32_19 = arith.constant 0 : i32
    %c0_i32_20 = arith.constant 0 : i32
    %15 = tpu.memref_slice %arg2[%c0_i32_18, %c0_i32_19, %c0_i32_20] : memref<3x8x128xf32, #tpu.memory_space<any>> -> memref<1x8x128xf32, #tpu.memory_space<any>>
    %16 = tpu.memref_slice %arg9[%c0_i32_17] : memref<1x!tpu.dma_semaphore, #tpu.memory_space<semaphore_mem>> -> memref<1x!tpu.dma_semaphore, #tpu.memory_space<semaphore_mem>>
    %17 = tpu.memref_squeeze %16 : memref<1x!tpu.dma_semaphore, #tpu.memory_space<semaphore_mem>> -> memref<!tpu.dma_semaphore, #tpu.memory_space<semaphore_mem>>
    tpu.enqueue_dma source(%15 : memref<1x8x128xf32, #tpu.memory_space<any>>) target(%arg6 : memref<1x8x128xf32, #tpu.memory_space<any>>) target_semaphore(%17 : memref<!tpu.dma_semaphore, #tpu.memory_space<semaphore_mem>>)
    %c0_i32_21 = arith.constant 0 : i32
    %c2_i32_22 = arith.constant 2 : i32
    %c0_i32_23 = arith.constant 0 : i32
    %c0_i32_24 = arith.constant 0 : i32
    %18 = tpu.memref_slice %arg0[%c2_i32_22, %c0_i32_23, %c0_i32_24] : memref<5x8x128xi32, #tpu.memory_space<any>> -> memref<3x8x128xi32, #tpu.memory_space<any>>
    %19 = tpu.memref_slice %arg9[%c0_i32_21] : memref<1x!tpu.dma_semaphore, #tpu.memory_space<semaphore_mem>> -> memref<1x!tpu.dma_semaphore, #tpu.memory_space<semaphore_mem>>
    %20 = tpu.memref_squeeze %19 : memref<1x!tpu.dma_semaphore, #tpu.memory_space<semaphore_mem>> -> memref<!tpu.dma_semaphore, #tpu.memory_space<semaphore_mem>>
    tpu.wait_dma2 semaphore(%20 : memref<!tpu.dma_semaphore, #tpu.memory_space<semaphore_mem>>) src(%18 : memref<3x8x128xi32, #tpu.memory_space<any>>) dst(%arg4 : memref<3x8x128xi32, #tpu.memory_space<any>>)
    %c0_i32_25 = arith.constant 0 : i32
    %c0_i32_26 = arith.constant 0 : i32
    %c0_i32_27 = arith.constant 0 : i32
    %c0_i32_28 = arith.constant 0 : i32
    %21 = tpu.memref_slice %arg0[%c0_i32_26, %c0_i32_27, %c0_i32_28] : memref<5x8x128xi32, #tpu.memory_space<any>> -> memref<2x8x128xi32, #tpu.memory_space<any>>
    %22 = tpu.memref_slice %arg9[%c0_i32_25] : memref<1x!tpu.dma_semaphore, #tpu.memory_space<semaphore_mem>> -> memref<1x!tpu.dma_semaphore, #tpu.memory_space<semaphore_mem>>
    %23 = tpu.memref_squeeze %22 : memref<1x!tpu.dma_semaphore, #tpu.memory_space<semaphore_mem>> -> memref<!tpu.dma_semaphore, #tpu.memory_space<semaphore_mem>>
    tpu.wait_dma2 semaphore(%23 : memref<!tpu.dma_semaphore, #tpu.memory_space<semaphore_mem>>) src(%21 : memref<2x8x128xi32, #tpu.memory_space<any>>) dst(%arg3 : memref<2x8x128xi32, #tpu.memory_space<any>>)
    %c0_i32_29 = arith.constant 0 : i32
    %c1_i32_30 = arith.constant 1 : i32
    %c0_i32_31 = arith.constant 0 : i32
    %c0_i32_32 = arith.constant 0 : i32
    %24 = tpu.memref_slice %arg1[%c1_i32_30, %c0_i32_31, %c0_i32_32] : memref<3x8x128xi32, #tpu.memory_space<any>> -> memref<2x8x128xi32, #tpu.memory_space<any>>
    %25 = tpu.memref_slice %arg9[%c0_i32_29] : memref<1x!tpu.dma_semaphore, #tpu.memory_space<semaphore_mem>> -> memref<1x!tpu.dma_semaphore, #tpu.memory_space<semaphore_mem>>
    %26 = tpu.memref_squeeze %25 : memref<1x!tpu.dma_semaphore, #tpu.memory_space<semaphore_mem>> -> memref<!tpu.dma_semaphore, #tpu.memory_space<semaphore_mem>>
    tpu.wait_dma2 semaphore(%26 : memref<!tpu.dma_semaphore, #tpu.memory_space<semaphore_mem>>) src(%24 : memref<2x8x128xi32, #tpu.memory_space<any>>) dst(%arg7 : memref<2x8x128xi32, #tpu.memory_space<any>>)
    %c0_i32_33 = arith.constant 0 : i32
    %c1_i32_34 = arith.constant 1 : i32
    %c0_i32_35 = arith.constant 0 : i32
    %c0_i32_36 = arith.constant 0 : i32
    %27 = tpu.memref_slice %arg2[%c1_i32_34, %c0_i32_35, %c0_i32_36] : memref<3x8x128xf32, #tpu.memory_space<any>> -> memref<2x8x128xf32, #tpu.memory_space<any>>
    %28 = tpu.memref_slice %arg9[%c0_i32_33] : memref<1x!tpu.dma_semaphore, #tpu.memory_space<semaphore_mem>> -> memref<1x!tpu.dma_semaphore, #tpu.memory_space<semaphore_mem>>
    %29 = tpu.memref_squeeze %28 : memref<1x!tpu.dma_semaphore, #tpu.memory_space<semaphore_mem>> -> memref<!tpu.dma_semaphore, #tpu.memory_space<semaphore_mem>>
    tpu.wait_dma2 semaphore(%29 : memref<!tpu.dma_semaphore, #tpu.memory_space<semaphore_mem>>) src(%27 : memref<2x8x128xf32, #tpu.memory_space<any>>) dst(%arg8 : memref<2x8x128xf32, #tpu.memory_space<any>>)
    %c0_i32_37 = arith.constant 0 : i32
    %c0_i32_38 = arith.constant 0 : i32
    %c0_i32_39 = arith.constant 0 : i32
    %c0_i32_40 = arith.constant 0 : i32
    %30 = tpu.memref_slice %arg1[%c0_i32_38, %c0_i32_39, %c0_i32_40] : memref<3x8x128xi32, #tpu.memory_space<any>> -> memref<1x8x128xi32, #tpu.memory_space<any>>
    %31 = tpu.memref_slice %arg9[%c0_i32_37] : memref<1x!tpu.dma_semaphore, #tpu.memory_space<semaphore_mem>> -> memref<1x!tpu.dma_semaphore, #tpu.memory_space<semaphore_mem>>
    %32 = tpu.memref_squeeze %31 : memref<1x!tpu.dma_semaphore, #tpu.memory_space<semaphore_mem>> -> memref<!tpu.dma_semaphore, #tpu.memory_space<semaphore_mem>>
    tpu.wait_dma2 semaphore(%32 : memref<!tpu.dma_semaphore, #tpu.memory_space<semaphore_mem>>) src(%30 : memref<1x8x128xi32, #tpu.memory_space<any>>) dst(%arg5 : memref<1x8x128xi32, #tpu.memory_space<any>>)
    %c0_i32_41 = arith.constant 0 : i32
    %c0_i32_42 = arith.constant 0 : i32
    %c0_i32_43 = arith.constant 0 : i32
    %c0_i32_44 = arith.constant 0 : i32
    %33 = tpu.memref_slice %arg2[%c0_i32_42, %c0_i32_43, %c0_i32_44] : memref<3x8x128xf32, #tpu.memory_space<any>> -> memref<1x8x128xf32, #tpu.memory_space<any>>
    %34 = tpu.memref_slice %arg9[%c0_i32_41] : memref<1x!tpu.dma_semaphore, #tpu.memory_space<semaphore_mem>> -> memref<1x!tpu.dma_semaphore, #tpu.memory_space<semaphore_mem>>
    %35 = tpu.memref_squeeze %34 : memref<1x!tpu.dma_semaphore, #tpu.memory_space<semaphore_mem>> -> memref<!tpu.dma_semaphore, #tpu.memory_space<semaphore_mem>>
    tpu.wait_dma2 semaphore(%35 : memref<!tpu.dma_semaphore, #tpu.memory_space<semaphore_mem>>) src(%33 : memref<1x8x128xf32, #tpu.memory_space<any>>) dst(%arg6 : memref<1x8x128xf32, #tpu.memory_space<any>>)
    return
  }
}

</mosaic_0001>

<llo_original>
// kernel: tpu_custom_call.1
$region0: #{tpu_custom_call.1}
  #allocation0 [shape = 'u32[]', space=smem, size = 0x4, offset = 0x4, fixed_abs, tag = 'smem constant byte address 0x4 - core index']
  #allocation1 [shape = 'u32[144,128]{1,0:T(1,128)}', space=vmem, size = 0x12000, scoped, tag = 'internal scratch']
  #allocation2 [shape = 's32[1]{0}', space=sflag, size = 0x4, scoped, tag = 'scratch operand']
  #allocation3 [shape = 's32[]', space=sflag, size = 0x4, offset = 0, fixed_abs, tag = 'sflag constant byte address 0x0 - dummy sync flag']
  #allocation4 [shape = 'u32[0]{0}', space=smem, size = 0, offset = 0, fixed_abs, tag = 'smem constant byte address 0x0 - null']
  #allocation5 [shape = 's32[]', space=sflag, size = 0x4, offset = 0, fixed_abs, tag = 'sflag constant byte address 0x0 - dummy sync flag']
  #allocation6 [shape = 'u32[0]{0}', space=smem, size = 0, offset = 0, fixed_abs, tag = 'smem constant byte address 0x0 - null']
  #allocation7 [shape = 's32[]', space=sflag, size = 0x4, offset = 0, fixed_abs, tag = 'sflag constant byte address 0x0 - dummy sync flag']
  #allocation8 [shape = 'u32[0]{0}', space=smem, size = 0, offset = 0, fixed_abs, tag = 'smem constant byte address 0x0 - null']
  #allocation9 [shape = 's32[]', space=sflag, size = 0x4, offset = 0, fixed_abs, tag = 'sflag constant byte address 0x0 - dummy sync flag']
  #allocation10 [shape = 'u32[0]{0}', space=smem, size = 0, offset = 0, fixed_abs, tag = 'smem constant byte address 0x0 - null']
  #allocation11 [shape = 's32[]', space=sflag, size = 0x4, offset = 0, fixed_abs, tag = 'sflag constant byte address 0x0 - dummy sync flag']
  #allocation12 [shape = 'u32[0]{0}', space=smem, size = 0, offset = 0, fixed_abs, tag = 'smem constant byte address 0x0 - null']
  #allocation13 [shape = 's32[]', space=sflag, size = 0x4, offset = 0, fixed_abs, tag = 'sflag constant byte address 0x0 - dummy sync flag']
  #allocation14 [shape = 'u32[0]{0}', space=smem, size = 0, offset = 0, fixed_abs, tag = 'smem constant byte address 0x0 - null']
  %s0 = inlined_call_operand.hbm [shape: s32[5,8,128], index: 0, kind: input, shape index: {}]
  %s1 = inlined_call_operand.hbm [shape: s32[3,8,128], index: 1, kind: input, shape index: {}]
  %s2 = inlined_call_operand.hbm [shape: f32[3,8,128], index: 2, kind: input, shape index: {}]
  %s3 = inlined_call_operand.hbm [shape: s32[2,8,128], index: 3, kind: output, shape index: {0}]
  %s4 = inlined_call_operand.hbm [shape: s32[3,8,128], index: 4, kind: output, shape index: {1}]
  %s5 = inlined_call_operand.hbm [shape: s32[1,8,128], index: 5, kind: output, shape index: {2}]
  %s6 = inlined_call_operand.hbm [shape: f32[1,8,128], index: 6, kind: output, shape index: {3}]
  %s7 = inlined_call_operand.hbm [shape: s32[2,8,128], index: 7, kind: output, shape index: {4}]
  %s8 = inlined_call_operand.hbm [shape: f32[2,8,128], index: 8, kind: output, shape index: {5}]
  %9 = xla_tuple %s3, %s4, %s5, %s6, %s7, %s8
  %s10 = sld [smem:[#allocation0]]
  $region2: #{tpu_custom_call.1} parent=0
    _
  %s12 = ssub.s32 1, %s10
  %s13 = scalar_select 0, %s12, %s10
  %s14 = scalar_lea.hbm %s0, 256
  %s16 = sshll.u32 1, 14
  %s17 = sxor.u32 4294967295, %s16
  %21 = dma.general %s14, 384, %s4, [#allocation2], 131072, [#allocation4], 0, 0
  %s23 = sshll.u32 1, 14
  %s24 = sxor.u32 4294967295, %s23
  %28 = dma.general %s0, 256, %s3, [#allocation2], 131072, [#allocation6], 0, 0
  %s29 = scalar_lea.hbm %s1, 128
  %s31 = sshll.u32 1, 14
  %s32 = sxor.u32 4294967295, %s31
  %36 = dma.general %s29, 256, %s7, [#allocation2], 131072, [#allocation8], 0, 0
  %s37 = scalar_lea.hbm %s2, 128
  %s39 = sshll.u32 1, 14
  %s40 = sxor.u32 4294967295, %s39
  %44 = dma.general %s37, 256, %s8, [#allocation2], 131072, [#allocation10], 0, 0
  %s46 = sshll.u32 1, 14
  %s47 = sxor.u32 4294967295, %s46
  %51 = dma.general %s1, 128, %s5, [#allocation2], 131072, [#allocation12], 0, 0
  %s53 = sshll.u32 1, 14
  %s54 = sxor.u32 4294967295, %s53
  %58 = dma.general %s2, 128, %s6, [#allocation2], 131072, [#allocation14], 0, 0
  %s59 = smul.u32 3, 8
  %s60 = smul.u32 %s59, 1
  %s61 = sshll.u32 %s60, 4
  %62 = dma.done [#allocation2], %s61
  %s63 = smul.u32 2, 8
  %s64 = smul.u32 %s63, 1
  %s65 = sshll.u32 %s64, 4
  %66 = dma.done [#allocation2], %s65
  %s67 = sshll.u32 %s64, 4
  %68 = dma.done [#allocation2], %s67
  %s69 = sshll.u32 %s64, 4
  %70 = dma.done [#allocation2], %s69
  %s71 = smul.u32 1, 8
  %s72 = smul.u32 %s71, 1
  %s73 = sshll.u32 %s72, 4
  %74 = dma.done [#allocation2], %s73
  %s75 = sshll.u32 %s72, 4
  %76 = dma.done [#allocation2], %s75
  %77 = vsyncmov [#allocation2]
  %s78 = vpop.sfrf %77
  %p79 = scmp.eq.s32.totalorder %s78, 0
  %p80 = pneg %p79
  %82 = shalt.err (%p80)

</llo_original>
